<compile_context>
chip_gen: v6e
topology: v6e:2x2x1
jax: 0.10.0
libtpu: 0.0.40
codegen_flags: <defaults>
</compile_context>

<pallas_src>
import functools

import jax
import jax.numpy as jnp
from jax.experimental import pallas as pl
from jax.experimental.pallas import tpu as pltpu

OUT_DIM = 2       # fixed by the module (out_dim = 2 in __init__)
LANE_PAD = 128    # pad the 2-wide final layer to a full lane for dense stores


def _fused_double_critic_kernel(x_ref, w1_ref, b1_ref, w2_ref, b2_ref,
                                w3_ref, b3_ref, o_ref, acc_ref):
    """One (head, k) grid step of a critic MLP, streamed over K tiles."""
    k = pl.program_id(1)
    nk = pl.num_programs(1)

    @pl.when(k == 0)
    def _init():
        acc_ref[...] = jnp.zeros_like(acc_ref)

    # Layer 1 tile: (B_pad, TK) = relu(x @ w1[:, k] + b1[:, k])  (f32 accumulate)
    x = x_ref[...].astype(w1_ref.dtype)
    h1 = jnp.dot(x, w1_ref[...], preferred_element_type=jnp.float32)
    h1 = jnp.maximum(h1 + b1_ref[...].astype(jnp.float32), 0.0)

    # Layer 2 partial sum: acc += h1_tile @ w2[k, :]
    acc_ref[...] += jnp.dot(h1.astype(w2_ref.dtype), w2_ref[...],
                            preferred_element_type=jnp.float32)

    @pl.when(k == nk - 1)
    def _finalize():
        h2 = jnp.maximum(acc_ref[...] + b2_ref[...].astype(jnp.float32), 0.0)
        out = jnp.dot(h2.astype(w3_ref.dtype), w3_ref[...],
                      preferred_element_type=jnp.float32)
        o_ref[...] = (out + b3_ref[...].astype(jnp.float32)).astype(o_ref.dtype)


def _choose_tk(d, w_bytes, budget_bytes=20 << 20):
    """Largest multiple-of-128 divisor of D whose double-buffered w1+w2 tiles
    fit a v7x-safe per-step VMEM budget."""
    if d % 128 != 0:
        return d  # small / odd hidden size: single full-extent block
    tk = 128
    for cand in range(128, d + 1, 128):
        if d % cand == 0 and 2 * (2 * d * cand * w_bytes) <= budget_bytes:
            tk = cand
    return tk


def _vmem_limit_bytes(b_pad, d, tk, w_bytes):
    per_step = (b_pad * d * 4                 # x (resident)
                + d * tk * w_bytes            # w1 tile
                + tk * 4                      # b1 tile
                + tk * d * w_bytes            # w2 tile
                + d * 4                       # b2
                + d * LANE_PAD * w_bytes      # w3
                + LANE_PAD * 4                # b3
                + b_pad * LANE_PAD * 4)       # out
    total = 2 * per_step + b_pad * d * 4      # double-buffering + accumulator
    return min(48 << 20, max(16 << 20, 2 * total))


@functools.partial(jax.jit, static_argnames=("tk",))
def vlm_double_critic_forward(lm_states, params, tk=None):
    """Equivalent of VLMDoubleCritic.forward after the base LM:
    returns (critic1(lm_states), critic2(lm_states)), each (B, 2) f32.

    Args:
      lm_states: (B, D) last-token hidden states.
      params: head-stacked tuple (w1, b1, w2, b2, w3, b3) with shapes
        (2,D,D), (2,1,D), (2,D,D), (2,1,D), (2,D,LANE_PAD), (2,1,LANE_PAD);
        weights pre-transposed to (in, out), final layer lane-padded.
      tk: K-tile size (multiple of 128 dividing D) or None to auto-pick.
    """
    w1, b1, w2, b2, w3, b3 = params
    n_heads, D, _ = w1.shape
    B = lm_states.shape[0]
    out_pad = w3.shape[-1]
    w_bytes = jnp.dtype(w1.dtype).itemsize

    if tk is None:
        tk = _choose_tk(D, w_bytes)
    if D % tk != 0 or (tk != D and tk % 128 != 0):
        tk = D
    nk = D // tk

    # Pad batch to a sublane multiple so all MXU operands / stores are aligned.
    B_pad = max(8, -(-B // 8) * 8)
    x = lm_states.astype(jnp.float32)
    if B_pad != B:
        x = jnp.pad(x, ((0, B_pad - B), (0, 0)))

    out = pl.pallas_call(
        _fused_double_critic_kernel,
        out_shape=jax.ShapeDtypeStruct((n_heads, B_pad, out_pad), jnp.float32),
        grid_spec=pltpu.PrefetchScalarGridSpec(
            num_scalar_prefetch=0,
            grid=(n_heads, nk),
            in_specs=[
                pl.BlockSpec((B_pad, D), lambda h, k: (0, 0)),            # x
                pl.BlockSpec((None, D, tk), lambda h, k: (h, 0, k)),      # w1 tile
                pl.BlockSpec((None, 1, tk), lambda h, k: (h, 0, k)),      # b1 tile
                pl.BlockSpec((None, tk, D), lambda h, k: (h, k, 0)),      # w2 tile
                pl.BlockSpec((None, 1, D), lambda h, k: (h, 0, 0)),       # b2
                pl.BlockSpec((None, D, out_pad), lambda h, k: (h, 0, 0)), # w3
                pl.BlockSpec((None, 1, out_pad), lambda h, k: (h, 0, 0)), # b3
            ],
            out_specs=pl.BlockSpec((None, B_pad, out_pad),
                                   lambda h, k: (h, 0, 0)),
            scratch_shapes=[pltpu.VMEM((B_pad, D), jnp.float32)],
        ),
        compiler_params=pltpu.CompilerParams(
            dimension_semantics=("parallel", "arbitrary"),
            vmem_limit_bytes=_vmem_limit_bytes(B_pad, D, tk, w_bytes),
        ),
    )(x, w1, b1, w2, b2, w3, b3)

    q1 = out[0, :B, :OUT_DIM]
    q2 = out[1, :B, :OUT_DIM]
    return q1, q2


def init_critic_params(key, in_dim, out_dim=OUT_DIM, initializer_range=0.2,
                       weight_dtype=jnp.bfloat16, out_pad=LANE_PAD):
    """One critic head, matching the PyTorch init: layers 0/2 weight ~ N(0, 0.2^2),
    bias = 0; the final Linear uses nn.Linear's default U(-1/sqrt(D), 1/sqrt(D)).
    Weights are pre-transposed to (in, out) and stored in bf16 for streaming;
    the final layer is zero-padded from out_dim to out_pad lanes."""
    k1, k2, k3w, k3b = jax.random.split(key, 4)
    w1 = (jax.random.normal(k1, (in_dim, in_dim), jnp.float32)
          * initializer_range).astype(weight_dtype)
    b1 = jnp.zeros((1, in_dim), jnp.float32)
    w2 = (jax.random.normal(k2, (in_dim, in_dim), jnp.float32)
          * initializer_range).astype(weight_dtype)
    b2 = jnp.zeros((1, in_dim), jnp.float32)
    bound = 1.0 / (in_dim ** 0.5)
    w3 = jax.random.uniform(k3w, (in_dim, out_dim), jnp.float32, -bound, bound)
    b3 = jax.random.uniform(k3b, (1, out_dim), jnp.float32, -bound, bound)
    w3 = jnp.pad(w3, ((0, 0), (0, out_pad - out_dim))).astype(weight_dtype)
    b3 = jnp.pad(b3, ((0, 0), (0, out_pad - out_dim)))
    return (w1, b1, w2, b2, w3, b3)


def stack_heads(params1, params2):
    """Stack the two critic heads along a leading head axis for the fused call."""
    return tuple(jnp.stack([p1, p2]) for p1, p2 in zip(params1, params2))


def _reference_head(x, head_params):
    """Pure-JAX reference for one critic head using the same bf16-weight /
    f32-accumulate numerics as the kernel."""
    w1, b1, w2, b2, w3, b3 = head_params
    f32 = jnp.float32
    h = jnp.dot(x.astype(w1.dtype), w1, preferred_element_type=f32) + b1
    h = jnp.maximum(h, 0.0)
    h = jnp.dot(h.astype(w2.dtype), w2, preferred_element_type=f32) + b2
    h = jnp.maximum(h, 0.0)
    out = jnp.dot(h.astype(w3.dtype), w3, preferred_element_type=f32) + b3
    return out[:, :OUT_DIM]


if __name__ == "__main__":
    B, D = 2, 256  # batch, hidden size (small demo; real VLM D = 2048..8192)

    key = jax.random.PRNGKey(0)
    k_x, k_c1, k_c2 = jax.random.split(key, 3)

    # TODO(synk): the HF AutoModelForCausalLM / AutoTokenizer stage that maps
    # `observation` -> last-token hidden state has no Pallas equivalent; we
    # feed synthetic lm_states of the correct shape instead.
    lm_states = jax.random.normal(k_x, (B, D), jnp.float32)

    params1 = init_critic_params(k_c1, D)
    params2 = init_critic_params(k_c2, D)
    params = stack_heads(params1, params2)

    # tk=128 forces a 2-step K stream at this toy size (exercises the
    # accumulator init / epilogue path); leave tk=None in real use.
    q1, q2 = vlm_double_critic_forward(lm_states, params, tk=128)
    q1, q2 = jax.block_until_ready((q1, q2))

    ref1 = _reference_head(lm_states, params1)
    ref2 = _reference_head(lm_states, params2)
    assert q1.shape == (B, OUT_DIM) and q2.shape == (B, OUT_DIM)
    assert jnp.allclose(q1, ref1, atol=1e-3, rtol=1e-3), \
        float(jnp.max(jnp.abs(q1 - ref1)))
    assert jnp.allclose(q2, ref2, atol=1e-3, rtol=1e-3), \
        float(jnp.max(jnp.abs(q2 - ref2)))

    print("KERNEL_OK")
</pallas_src>

<mosaic_0001>
module attributes {stable_mosaic.version = 11 : i64} {
  func.func @_fused_double_critic_kernel(%arg0: i32, %arg1: i32, %arg2: memref<8x256xf32, #tpu.memory_space<vmem>>, %arg3: memref<1x256x128xbf16, #tpu.memory_space<vmem>>, %arg4: memref<1x1x128xf32, #tpu.memory_space<vmem>>, %arg5: memref<1x128x256xbf16, #tpu.memory_space<vmem>>, %arg6: memref<1x1x256xf32, #tpu.memory_space<vmem>>, %arg7: memref<1x256x128xbf16, #tpu.memory_space<vmem>>, %arg8: memref<1x1x128xf32, #tpu.memory_space<vmem>>, %arg9: memref<1x8x128xf32, #tpu.memory_space<vmem>>, %arg10: memref<8x256xf32, #tpu.memory_space<vmem>>) attributes {dimension_semantics = [#tpu.dimension_semantics<parallel>, #tpu.dimension_semantics<arbitrary>], iteration_bounds = array<i64: 2, 2>, scalar_prefetch = 0 : i64, scratch_operands = 1 : i64, tpu.core_type = #tpu.core_type<tc>, window_params = [{pipeline_mode = #tpu.pipeline_mode<synchronous>, transform_indices = @transform_0, window_bounds = array<i64: 8, 256>}, {transform_indices = @transform_1, window_bounds = array<i64: 1, 256, 128>}, {transform_indices = @transform_2, window_bounds = array<i64: 1, 1, 128>}, {transform_indices = @transform_3, window_bounds = array<i64: 1, 128, 256>}, {transform_indices = @transform_4, window_bounds = array<i64: 1, 1, 256>}, {transform_indices = @transform_5, window_bounds = array<i64: 1, 256, 128>}, {transform_indices = @transform_6, window_bounds = array<i64: 1, 1, 128>}, {transform_indices = @transform_7, window_bounds = array<i64: 1, 8, 128>}]} {
    %c0_i32 = arith.constant 0 : i32
    %0 = arith.cmpi eq, %arg1, %c0_i32 : i32
    %1 = arith.extui %0 : i1 to i32
    %c0_i32_0 = arith.constant 0 : i32
    %2 = arith.cmpi ne, %1, %c0_i32_0 : i32
    scf.if %2 {
      %cst_18 = arith.constant 0.000000e+00 : f32
      %24 = vector.broadcast %cst_18 : f32 to vector<8x256xf32>
      %c0_19 = arith.constant 0 : index
      %c0_20 = arith.constant 0 : index
      %25 = vector.load %arg10[%c0_19, %c0_20] : memref<8x256xf32, #tpu.memory_space<vmem>>, vector<8x256xf32>
      tpu.vector_store %arg10[%c0_19, %c0_20], %24 {strides = array<i32>} : memref<8x256xf32, #tpu.memory_space<vmem>>, vector<8x256xf32>,
    } else {
    }
    %c0 = arith.constant 0 : index
    %c0_1 = arith.constant 0 : index
    %3 = vector.load %arg2[%c0, %c0_1] : memref<8x256xf32, #tpu.memory_space<vmem>>, vector<8x256xf32>
    %4 = arith.truncf %3 : vector<8x256xf32> to vector<8x256xbf16>
    %c0_2 = arith.constant 0 : index
    %c0_3 = arith.constant 0 : index
    %c0_4 = arith.constant 0 : index
    %5 = vector.load %arg3[%c0_2, %c0_3, %c0_4] : memref<1x256x128xbf16, #tpu.memory_space<vmem>>, vector<1x256x128xbf16>
    %6 = vector.shape_cast %5 : vector<1x256x128xbf16> to vector<256x128xbf16>
    %cst = arith.constant dense<0.000000e+00> : vector<8x128xf32>
    %7 = tpu.matmul %4, %6, %cst {dimension_numbers = #tpu.dot_dimension_numbers<[1], [0], [0], [1], [0, 0, 1, 1], [], []>} : vector<8x256xbf16>, vector<256x128xbf16>, vector<8x128xf32> -> vector<8x128xf32>
    %c0_5 = arith.constant 0 : index
    %c0_6 = arith.constant 0 : index
    %c0_7 = arith.constant 0 : index
    %8 = vector.load %arg4[%c0_5, %c0_6, %c0_7] : memref<1x1x128xf32, #tpu.memory_space<vmem>>, vector<1x1x128xf32>
    %9 = vector.shape_cast %8 : vector<1x1x128xf32> to vector<1x128xf32>
    %10 = vector.broadcast %9 : vector<1x128xf32> to vector<8x128xf32>
    %11 = arith.addf %7, %10 : vector<8x128xf32>
    %cst_8 = arith.constant 0.000000e+00 : f32
    %12 = vector.broadcast %cst_8 : f32 to vector<8x128xf32>
    %13 = arith.maximumf %11, %12 : vector<8x128xf32>
    %c0_9 = arith.constant 0 : index
    %c0_10 = arith.constant 0 : index
    %14 = vector.load %arg10[%c0_9, %c0_10] : memref<8x256xf32, #tpu.memory_space<vmem>>, vector<8x256xf32>
    %15 = arith.truncf %13 : vector<8x128xf32> to vector<8x128xbf16>
    %c0_11 = arith.constant 0 : index
    %c0_12 = arith.constant 0 : index
    %c0_13 = arith.constant 0 : index
    %16 = vector.load %arg5[%c0_11, %c0_12, %c0_13] : memref<1x128x256xbf16, #tpu.memory_space<vmem>>, vector<1x128x256xbf16>
    %17 = vector.shape_cast %16 : vector<1x128x256xbf16> to vector<128x256xbf16>
    %cst_14 = arith.constant dense<0.000000e+00> : vector<8x256xf32>
    %18 = tpu.matmul %15, %17, %cst_14 {dimension_numbers = #tpu.dot_dimension_numbers<[1], [0], [0], [1], [0, 0, 1, 1], [], []>} : vector<8x128xbf16>, vector<128x256xbf16>, vector<8x256xf32> -> vector<8x256xf32>
    %19 = arith.addf %14, %18 : vector<8x256xf32>
    %c0_15 = arith.constant 0 : index
    %c0_16 = arith.constant 0 : index
    %20 = vector.load %arg10[%c0_15, %c0_16] : memref<8x256xf32, #tpu.memory_space<vmem>>, vector<8x256xf32>
    tpu.vector_store %arg10[%c0_15, %c0_16], %19 {strides = array<i32>} : memref<8x256xf32, #tpu.memory_space<vmem>>, vector<8x256xf32>,
    %c1_i32 = arith.constant 1 : i32
    %21 = arith.cmpi eq, %arg1, %c1_i32 : i32
    %22 = arith.extui %21 : i1 to i32
    %c0_i32_17 = arith.constant 0 : i32
    %23 = arith.cmpi ne, %22, %c0_i32_17 : i32
    scf.if %23 {
      %c0_18 = arith.constant 0 : index
      %c0_19 = arith.constant 0 : index
      %24 = vector.load %arg10[%c0_18, %c0_19] : memref<8x256xf32, #tpu.memory_space<vmem>>, vector<8x256xf32>
      %c0_20 = arith.constant 0 : index
      %c0_21 = arith.constant 0 : index
      %c0_22 = arith.constant 0 : index
      %25 = vector.load %arg6[%c0_20, %c0_21, %c0_22] : memref<1x1x256xf32, #tpu.memory_space<vmem>>, vector<1x1x256xf32>
      %26 = vector.shape_cast %25 : vector<1x1x256xf32> to vector<1x256xf32>
      %27 = vector.broadcast %26 : vector<1x256xf32> to vector<8x256xf32>
      %28 = arith.addf %24, %27 : vector<8x256xf32>
      %cst_23 = arith.constant 0.000000e+00 : f32
      %29 = vector.broadcast %cst_23 : f32 to vector<8x256xf32>
      %30 = arith.maximumf %28, %29 : vector<8x256xf32>
      %31 = arith.truncf %30 : vector<8x256xf32> to vector<8x256xbf16>
      %c0_24 = arith.constant 0 : index
      %c0_25 = arith.constant 0 : index
      %c0_26 = arith.constant 0 : index
      %32 = vector.load %arg7[%c0_24, %c0_25, %c0_26] : memref<1x256x128xbf16, #tpu.memory_space<vmem>>, vector<1x256x128xbf16>
      %33 = vector.shape_cast %32 : vector<1x256x128xbf16> to vector<256x128xbf16>
      %cst_27 = arith.constant dense<0.000000e+00> : vector<8x128xf32>
      %34 = tpu.matmul %31, %33, %cst_27 {dimension_numbers = #tpu.dot_dimension_numbers<[1], [0], [0], [1], [0, 0, 1, 1], [], []>} : vector<8x256xbf16>, vector<256x128xbf16>, vector<8x128xf32> -> vector<8x128xf32>
      %c0_28 = arith.constant 0 : index
      %c0_29 = arith.constant 0 : index
      %c0_30 = arith.constant 0 : index
      %35 = vector.load %arg8[%c0_28, %c0_29, %c0_30] : memref<1x1x128xf32, #tpu.memory_space<vmem>>, vector<1x1x128xf32>
      %36 = vector.shape_cast %35 : vector<1x1x128xf32> to vector<1x128xf32>
      %37 = vector.broadcast %36 : vector<1x128xf32> to vector<8x128xf32>
      %38 = arith.addf %34, %37 : vector<8x128xf32>
      %c0_31 = arith.constant 0 : index
      %c0_32 = arith.constant 0 : index
      %c0_33 = arith.constant 0 : index
      %39 = vector.load %arg9[%c0_31, %c0_32, %c0_33] : memref<1x8x128xf32, #tpu.memory_space<vmem>>, vector<1x8x128xf32>
      %40 = vector.shape_cast %39 : vector<1x8x128xf32> to vector<8x128xf32>
      %41 = vector.shape_cast %38 : vector<8x128xf32> to vector<1x8x128xf32>
      tpu.vector_store %arg9[%c0_31, %c0_32, %c0_33], %41 {strides = array<i32>} : memref<1x8x128xf32, #tpu.memory_space<vmem>>, vector<1x8x128xf32>,
    } else {
    }
    return
  }
  func.func @transform_0(%arg0: i32, %arg1: i32) -> (i32, i32) {
    %c0_i32 = arith.constant 0 : i32
    %c0_i32_0 = arith.constant 0 : i32
    %c0_i32_1 = arith.constant 0 : i32
    return %c0_i32, %c0_i32_0 : i32, i32
  }
  func.func @transform_1(%arg0: i32, %arg1: i32) -> (i32, i32, i32) {
    %c0_i32 = arith.constant 0 : i32
    %c0_i32_0 = arith.constant 0 : i32
    return %arg0, %c0_i32, %arg1 : i32, i32, i32
  }
  func.func @transform_2(%arg0: i32, %arg1: i32) -> (i32, i32, i32) {
    %c0_i32 = arith.constant 0 : i32
    %c0_i32_0 = arith.constant 0 : i32
    return %arg0, %c0_i32, %arg1 : i32, i32, i32
  }
  func.func @transform_3(%arg0: i32, %arg1: i32) -> (i32, i32, i32) {
    %c0_i32 = arith.constant 0 : i32
    %c0_i32_0 = arith.constant 0 : i32
    return %arg0, %arg1, %c0_i32 : i32, i32, i32
  }
  func.func @transform_4(%arg0: i32, %arg1: i32) -> (i32, i32, i32) {
    %c0_i32 = arith.constant 0 : i32
    %c0_i32_0 = arith.constant 0 : i32
    %c0_i32_1 = arith.constant 0 : i32
    return %arg0, %c0_i32, %c0_i32_0 : i32, i32, i32
  }
  func.func @transform_5(%arg0: i32, %arg1: i32) -> (i32, i32, i32) {
    %c0_i32 = arith.constant 0 : i32
    %c0_i32_0 = arith.constant 0 : i32
    %c0_i32_1 = arith.constant 0 : i32
    return %arg0, %c0_i32, %c0_i32_0 : i32, i32, i32
  }
  func.func @transform_6(%arg0: i32, %arg1: i32) -> (i32, i32, i32) {
    %c0_i32 = arith.constant 0 : i32
    %c0_i32_0 = arith.constant 0 : i32
    %c0_i32_1 = arith.constant 0 : i32
    return %arg0, %c0_i32, %c0_i32_0 : i32, i32, i32
  }
  func.func @transform_7(%arg0: i32, %arg1: i32) -> (i32, i32, i32) {
    %c0_i32 = arith.constant 0 : i32
    %c0_i32_0 = arith.constant 0 : i32
    %c0_i32_1 = arith.constant 0 : i32
    return %arg0, %c0_i32, %c0_i32_0 : i32, i32, i32
  }
}

</mosaic_0001>

<llo_original>
// kernel: vlm_double_critic_forward.1
$region0: #{vlm_double_critic_forward.1}
  #allocation0 [shape = 'u32[]', space=smem, size = 0x4, offset = 0x4, fixed_abs, tag = 'smem constant byte address 0x4 - core index']
  #allocation1 [shape = 'u32[144,128]{1,0:T(1,128)}', space=vmem, size = 0x12000, scoped, tag = 'internal scratch']
  #allocation2 [shape = 'f32[8,256]{1,0:T(8,128)}', space=vmem, size = 0x2000, scoped, tag = 'scratch operand']
  %s0 = inlined_call_operand.vmem [shape: f32[8,256], index: 0, kind: input, shape index: {}]
  %s1 = inlined_call_operand.hbm [shape: bf16[2,256,256], index: 1, kind: input, shape index: {}]
  %s2 = inlined_call_operand.vmem [shape: f32[2,1,256], index: 2, kind: input, shape index: {}]
  %s3 = inlined_call_operand.hbm [shape: bf16[2,256,256], index: 3, kind: input, shape index: {}]
  %s4 = inlined_call_operand.vmem [shape: f32[2,1,256], index: 4, kind: input, shape index: {}]
  %s5 = inlined_call_operand.hbm [shape: bf16[2,256,128], index: 5, kind: input, shape index: {}]
  %s6 = inlined_call_operand.vmem [shape: f32[2,1,128], index: 6, kind: input, shape index: {}]
  %s7 = inlined_call_operand.vmem [shape: f32[2,8,128], index: 7, kind: output, shape index: {}]
  %s8 = sld [smem:[#allocation0]]
  $region81: #{vlm_double_critic_forward.1} parent=0
    _
  %s10 = ssub.s32 1, %s8
  %s11 = scalar_select 0, %s10, %s8
  $region1: #{vlm_double_critic_forward.1} parent=0
    #allocation3 [shape = 'u8[131072]{0}', space=vmem, size = 0x20000, scoped, tag = 'input window, operand 1']
    #allocation4 [shape = 's32[2]{0}', space=sflag, size = 0x8, scoped, tag = 'scoped memory for vlm_double_critic_forward.1']
    #allocation5 [shape = 'u8[131072]{0}', space=vmem, size = 0x20000, scoped, tag = 'input window, operand 3']
    #allocation6 [shape = 's32[2]{0}', space=sflag, size = 0x8, scoped, tag = 'scoped memory for vlm_double_critic_forward.1']
    #allocation7 [shape = 'u8[131072]{0}', space=vmem, size = 0x20000, scoped, tag = 'input window, operand 5']
    %12 = vsyncpa [#allocation4], 0
    %s13 = scalar_lea.sflag [#allocation4], 1
    %14 = vsyncpa %s13, 0
    %15 = vsyncpa [#allocation6], 0
    %s16 = scalar_lea.sflag [#allocation6], 1
    %17 = vsyncpa %s16, 0
    loop: start=0, step=1, limit=6
    $region2: #{vlm_double_critic_forward.1} parent=1 // loop_pre_header
      _
    $region3: #{vlm_double_critic_forward.1} parent=1 // loop_header
      %s19 = sphi 0, %s23
      %p20 = scmp.ge.s32.totalorder %s19, 6
      %s26 = sphi 0, %s38
      %s27 = sphi 0, %s34
      %s28 = sphi 0, %s26
      %s29 = sphi 0, %s27
      %s30 = sphi 0, %s28
      %s31 = sphi 0, %s29
      %s39 = sphi 0, %s39
      %s41 = sphi 0, %s39
      %s42 = sphi 0, %s41
      %s56 = sphi 0, %s42
      %s64 = sphi 0, %s66
      %s67 = sphi 0, %s64
      %s68 = sphi 0, %s67
      %s84 = sphi 0, %s68
      %s92 = sphi 0, %s94
      %s95 = sphi 0, %s92
      %s96 = sphi 0, %s95
      %s112 = sphi 0, %s96
      %s120 = sphi 0, %s122
      %s123 = sphi 0, %s120
      %s124 = sphi 0, %s123
      %s140 = sphi 0, %s124
      %s146 = sphi 0, %s148
      %s149 = sphi 0, %s146
      %s150 = sphi 0, %s149
      %s166 = sphi 0, %s150
      %s172 = sphi 0, %s174
      %s175 = sphi 0, %s172
      %s176 = sphi 0, %s175
      %s192 = sphi 0, %s176
      %s198 = sphi 0, %s200
      %s201 = sphi 0, %s198
      %s202 = sphi 0, %s201
      %s218 = sphi 0, %s202
      %s224 = sphi 0, %s226
      %s227 = sphi 0, %s224
      %s228 = sphi 0, %s227
      %s244 = sphi 0, %s228
    $region4: #{vlm_double_critic_forward.1} parent=1 // loop_header_branch
      %22 = sbr.rel (%p20) target = $region8
    $region5: #{vlm_double_critic_forward.1} parent=1 // loop_body
      %s24 = ssub.s32 %s19, 1
      %s25 = ssub.s32 %s19, 2
      %s32 = sadd.s32 1, %s27
      %p33 = scmp.ge.s32.totalorder %s32, 2
      %s34 = scalar_select %p33, 0, %s32
      %s35 = sadd.s32 1, %s26
      %s36 = scalar_select %p33, %s35, %s26
      %p37 = scmp.ge.s32.totalorder %s36, 2
      %s38 = scalar_select %p37, 0, %s36
      %s40 = sadd.s32 %s39, 1
      %p43 = scmp.eq.s32.totalorder %s19, 3
      %p44 = scmp.ne.s32.totalorder %s39, %s41
      %p45 = scmp.eq.s32.totalorder %s19, 0
      %p46 = por %p44, %p45
      %p47 = scmp.ne.s32.totalorder %s39, %s41
      %p48 = scmp.eq.s32.totalorder %s24, 3
      %p49 = por %p47, %p48
      %p50 = scmp.ne.s32.totalorder %s41, %s42
      %p51 = scmp.eq.s32.totalorder %s24, 0
      %p52 = por %p50, %p51
      %p53 = scmp.ne.s32.totalorder %s41, %s42
      %p54 = scmp.eq.s32.totalorder %s25, 3
      %p55 = por %p53, %p54
      %p57 = scmp.ne.s32.totalorder %s42, %s56
      %p58 = scmp.eq.s32.totalorder %s25, 0
      %p59 = por %p57, %p58
      %s60 = ssub.s32 %s26, %s38
      %s61 = ssub.s32 %s27, %s34
      %s62 = sor.u32 %s60, %s61
      %p63 = scmp.eq.s32.totalorder %s62, 0
      %s65 = sadd.s32 %s64, 1
      %s66 = scalar_select %p63, %s64, %s65
      %p69 = pneg %p63
      %p70 = scmp.eq.s32.totalorder %s19, 3
      %p71 = por %p69, %p70
      %p72 = scmp.ne.s32.totalorder %s64, %s67
      %p73 = scmp.eq.s32.totalorder %s19, 0
      %p74 = por %p72, %p73
      %p75 = scmp.ne.s32.totalorder %s64, %s67
      %p76 = scmp.eq.s32.totalorder %s24, 3
      %p77 = por %p75, %p76
      %p78 = scmp.ne.s32.totalorder %s67, %s68
      %p79 = scmp.eq.s32.totalorder %s24, 0
      %p80 = por %p78, %p79
      %p81 = scmp.ne.s32.totalorder %s67, %s68
      %p82 = scmp.eq.s32.totalorder %s25, 3
      %p83 = por %p81, %p82
      %p85 = scmp.ne.s32.totalorder %s68, %s84
      %p86 = scmp.eq.s32.totalorder %s25, 0
      %p87 = por %p85, %p86
      %s88 = ssub.s32 %s26, %s38
      %s89 = ssub.s32 %s27, %s34
      %s90 = sor.u32 %s88, %s89
      %p91 = scmp.eq.s32.totalorder %s90, 0
      %s93 = sadd.s32 %s92, 1
      %s94 = scalar_select %p91, %s92, %s93
      %p97 = pneg %p91
      %p98 = scmp.eq.s32.totalorder %s19, 3
      %p99 = por %p97, %p98
      %p100 = scmp.ne.s32.totalorder %s92, %s95
      %p101 = scmp.eq.s32.totalorder %s19, 0
      %p102 = por %p100, %p101
      %p103 = scmp.ne.s32.totalorder %s92, %s95
      %p104 = scmp.eq.s32.totalorder %s24, 3
      %p105 = por %p103, %p104
      %p106 = scmp.ne.s32.totalorder %s95, %s96
      %p107 = scmp.eq.s32.totalorder %s24, 0
      %p108 = por %p106, %p107
      %p109 = scmp.ne.s32.totalorder %s95, %s96
      %p110 = scmp.eq.s32.totalorder %s25, 3
      %p111 = por %p109, %p110
      %p113 = scmp.ne.s32.totalorder %s96, %s112
      %p114 = scmp.eq.s32.totalorder %s25, 0
      %p115 = por %p113, %p114
      %s116 = ssub.s32 %s26, %s38
      %s117 = ssub.s32 %s27, %s34
      %s118 = sor.u32 %s116, %s117
      %p119 = scmp.eq.s32.totalorder %s118, 0
      %s121 = sadd.s32 %s120, 1
      %s122 = scalar_select %p119, %s120, %s121
      %p125 = pneg %p119
      %p126 = scmp.eq.s32.totalorder %s19, 3
      %p127 = por %p125, %p126
      %p128 = scmp.ne.s32.totalorder %s120, %s123
      %p129 = scmp.eq.s32.totalorder %s19, 0
      %p130 = por %p128, %p129
      %p131 = scmp.ne.s32.totalorder %s120, %s123
      %p132 = scmp.eq.s32.totalorder %s24, 3
      %p133 = por %p131, %p132
      %p134 = scmp.ne.s32.totalorder %s123, %s124
      %p135 = scmp.eq.s32.totalorder %s24, 0
      %p136 = por %p134, %p135
      %p137 = scmp.ne.s32.totalorder %s123, %s124
      %p138 = scmp.eq.s32.totalorder %s25, 3
      %p139 = por %p137, %p138
      %p141 = scmp.ne.s32.totalorder %s124, %s140
      %p142 = scmp.eq.s32.totalorder %s25, 0
      %p143 = por %p141, %p142
      %s144 = ssub.s32 %s26, %s38
      %p145 = scmp.eq.s32.totalorder %s144, 0
      %s147 = sadd.s32 %s146, 1
      %s148 = scalar_select %p145, %s146, %s147
      %p151 = pneg %p145
      %p152 = scmp.eq.s32.totalorder %s19, 3
      %p153 = por %p151, %p152
      %p154 = scmp.ne.s32.totalorder %s146, %s149
      %p155 = scmp.eq.s32.totalorder %s19, 0
      %p156 = por %p154, %p155
      %p157 = scmp.ne.s32.totalorder %s146, %s149
      %p158 = scmp.eq.s32.totalorder %s24, 3
      %p159 = por %p157, %p158
      %p160 = scmp.ne.s32.totalorder %s149, %s150
      %p161 = scmp.eq.s32.totalorder %s24, 0
      %p162 = por %p160, %p161
      %p163 = scmp.ne.s32.totalorder %s149, %s150
      %p164 = scmp.eq.s32.totalorder %s25, 3
      %p165 = por %p163, %p164
      %p167 = scmp.ne.s32.totalorder %s150, %s166
      %p168 = scmp.eq.s32.totalorder %s25, 0
      %p169 = por %p167, %p168
      %s170 = ssub.s32 %s26, %s38
      %p171 = scmp.eq.s32.totalorder %s170, 0
      %s173 = sadd.s32 %s172, 1
      %s174 = scalar_select %p171, %s172, %s173
      %p177 = pneg %p171
      %p178 = scmp.eq.s32.totalorder %s19, 3
      %p179 = por %p177, %p178
      %p180 = scmp.ne.s32.totalorder %s172, %s175
      %p181 = scmp.eq.s32.totalorder %s19, 0
      %p182 = por %p180, %p181
      %p183 = scmp.ne.s32.totalorder %s172, %s175
      %p184 = scmp.eq.s32.totalorder %s24, 3
      %p185 = por %p183, %p184
      %p186 = scmp.ne.s32.totalorder %s175, %s176
      %p187 = scmp.eq.s32.totalorder %s24, 0
      %p188 = por %p186, %p187
      %p189 = scmp.ne.s32.totalorder %s175, %s176
      %p190 = scmp.eq.s32.totalorder %s25, 3
      %p191 = por %p189, %p190
      %p193 = scmp.ne.s32.totalorder %s176, %s192
      %p194 = scmp.eq.s32.totalorder %s25, 0
      %p195 = por %p193, %p194
      %s196 = ssub.s32 %s26, %s38
      %p197 = scmp.eq.s32.totalorder %s196, 0
      %s199 = sadd.s32 %s198, 1
      %s200 = scalar_select %p197, %s198, %s199
      %p203 = pneg %p197
      %p204 = scmp.eq.s32.totalorder %s19, 3
      %p205 = por %p203, %p204
      %p206 = scmp.ne.s32.totalorder %s198, %s201
      %p207 = scmp.eq.s32.totalorder %s19, 0
      %p208 = por %p206, %p207
      %p209 = scmp.ne.s32.totalorder %s198, %s201
      %p210 = scmp.eq.s32.totalorder %s24, 3
      %p211 = por %p209, %p210
      %p212 = scmp.ne.s32.totalorder %s201, %s202
      %p213 = scmp.eq.s32.totalorder %s24, 0
      %p214 = por %p212, %p213
      %p215 = scmp.ne.s32.totalorder %s201, %s202
      %p216 = scmp.eq.s32.totalorder %s25, 3
      %p217 = por %p215, %p216
      %p219 = scmp.ne.s32.totalorder %s202, %s218
      %p220 = scmp.eq.s32.totalorder %s25, 0
      %p221 = por %p219, %p220
      %s222 = ssub.s32 %s26, %s38
      %p223 = scmp.eq.s32.totalorder %s222, 0
      %s225 = sadd.s32 %s224, 1
      %s226 = scalar_select %p223, %s224, %s225
      %p229 = pneg %p223
      %p230 = scmp.eq.s32.totalorder %s19, 3
      %p231 = por %p229, %p230
      %p232 = scmp.ne.s32.totalorder %s224, %s227
      %p233 = scmp.eq.s32.totalorder %s19, 0
      %p234 = por %p232, %p233
      %p235 = scmp.ne.s32.totalorder %s224, %s227
      %p236 = scmp.eq.s32.totalorder %s24, 3
      %p237 = por %p235, %p236
      %p238 = scmp.ne.s32.totalorder %s227, %s228
      %p239 = scmp.eq.s32.totalorder %s24, 0
      %p240 = por %p238, %p239
      %p241 = scmp.ne.s32.totalorder %s227, %s228
      %p242 = scmp.eq.s32.totalorder %s25, 3
      %p243 = por %p241, %p242
      %p245 = scmp.ne.s32.totalorder %s228, %s244
      %p246 = scmp.eq.s32.totalorder %s25, 0
      %p247 = por %p245, %p246
      %p248 = scmp.le.s32.totalorder 1, %s19
      %p249 = scmp.lt.s32.totalorder %s19, 5
      %p250 = pnand %p248, %p249
      %p251 = pneg %p250
      // Predicated region
      $region9: #{vlm_double_critic_forward.1} parent=5 // pred_check
        _
      $region10: #{vlm_double_critic_forward.1} parent=5 // pred_check_branch
        %253 = sbr.rel (%p250) target = $region12
      $region11: #{vlm_double_critic_forward.1} parent=5 // pred_region
        %s254 = ssub.s32 %s19, 1
        // Predicated region
        $region13: #{vlm_double_critic_forward.1} parent=11 // pred_check
          %p255 = pneg %p52
        $region14: #{vlm_double_critic_forward.1} parent=11 // pred_check_branch
          %257 = sbr.rel (%p255) target = $region16
        $region15: #{vlm_double_critic_forward.1} parent=11 // pred_region
          _
        $region16: #{vlm_double_critic_forward.1} parent=11 // pred_fallthru
          _
      $region12: #{vlm_double_critic_forward.1} parent=5 // pred_fallthru
        _
      %p258 = scmp.lt.s32.totalorder %s19, 4
      // Predicated region
      $region17: #{vlm_double_critic_forward.1} parent=5 // pred_check
        %p259 = pneg %p258
      $region18: #{vlm_double_critic_forward.1} parent=5 // pred_check_branch
        %261 = sbr.rel (%p259) target = $region20
      $region19: #{vlm_double_critic_forward.1} parent=5 // pred_region
        // Predicated region
        $region21: #{vlm_double_critic_forward.1} parent=19 // pred_check
          %p262 = pneg %p74
        $region22: #{vlm_double_critic_forward.1} parent=19 // pred_check_branch
          %264 = sbr.rel (%p262) target = $region24
        $region23: #{vlm_double_critic_forward.1} parent=19 // pred_region
          %s265 = sand.u32 %s64, 1
          %s266 = scalar_lea.sflag [#allocation4], %s265
          %s267 = sand.u32 %s64, 1
          %s268 = smul.addr %s267, 128
          %s269 = scalar_lea.vmem [#allocation3], %s268
          %s271 = ssub.s32 2048, 2048
          %272 = vsyncadd %s266, %s271
          %s273 = smul.addr %s26, 64
          %s274 = sadd.s32 %s27, %s273
          %s275 = smul.addr %s274, 64
          %s276 = scalar_lea.hbm %s1, %s275
          %s277 = sshll.u32 %s269, 4
          %s278 = int_to_ptr.vmem [resolvable:$true] %s277
          %283 = dma.hbm_to_vmem [thread:$0]  %s276, 2048, %s278, %s266, 128, 64, 4
        $region24: #{vlm_double_critic_forward.1} parent=19 // pred_fallthru
          _
        // Predicated region
        $region25: #{vlm_double_critic_forward.1} parent=19 // pred_check
          %p284 = pneg %p102
        $region26: #{vlm_double_critic_forward.1} parent=19 // pred_check_branch
          %286 = sbr.rel (%p284) target = $region28
        $region27: #{vlm_double_critic_forward.1} parent=19 // pred_region
          %p287 = scmp.lt.s32.totalorder %s26, 1
          %s288 = scalar_select %p287, %s26, 1
          %p289 = scmp.lt.s32.totalorder %s27, 1
          %s290 = scalar_select %p289, %s27, 1
          %s291 = smul.addr %s288, 2
          %s292 = sadd.s32 %s290, %s291
          %s293 = scalar_lea.vmem %s2, %s292
        $region28: #{vlm_double_critic_forward.1} parent=19 // pred_fallthru
          _
        // Predicated region
        $region29: #{vlm_double_critic_forward.1} parent=19 // pred_check
          %p294 = pneg %p130
        $region30: #{vlm_double_critic_forward.1} parent=19 // pred_check_branch
          %296 = sbr.rel (%p294) target = $region32
        $region31: #{vlm_double_critic_forward.1} parent=19 // pred_region
          %s297 = sand.u32 %s19, 1
          %s298 = scalar_lea.sflag [#allocation6], %s297
          %s299 = sand.u32 %s120, 1
          %s300 = smul.addr %s299, 128
          %s301 = scalar_lea.vmem [#allocation5], %s300
          %s302 = smul.u32 16, %s27
          %s304 = ssub.s32 2048, 2048
          %305 = vsyncadd %s298, %s304
          %s306 = smul.addr %s302, 2
          %s307 = smul.addr %s26, 64
          %s308 = sadd.s32 %s306, %s307
          %s309 = smul.addr %s308, 64
          %s310 = scalar_lea.hbm %s3, %s309
          %s311 = sshll.u32 %s301, 4
          %s312 = int_to_ptr.vmem [resolvable:$true] %s311
          %317 = dma.hbm_to_vmem [thread:$0]  %s310, 2048, %s312, %s298, 128, 128, 8
        $region32: #{vlm_double_critic_forward.1} parent=19 // pred_fallthru
          _
        // Predicated region
        $region33: #{vlm_double_critic_forward.1} parent=19 // pred_check
          %p318 = pneg %p156
        $region34: #{vlm_double_critic_forward.1} parent=19 // pred_check_branch
          %320 = sbr.rel (%p318) target = $region36
        $region35: #{vlm_double_critic_forward.1} parent=19 // pred_region
          %p321 = scmp.lt.s32.totalorder %s26, 1
          %s322 = scalar_select %p321, %s26, 1
          %s323 = smul.addr %s322, 2
          %s324 = scalar_lea.vmem %s4, %s323
        $region36: #{vlm_double_critic_forward.1} parent=19 // pred_fallthru
          _
        // Predicated region
        $region37: #{vlm_double_critic_forward.1} parent=19 // pred_check
          %p325 = pneg %p182
        $region38: #{vlm_double_critic_forward.1} parent=19 // pred_check_branch
          %327 = sbr.rel (%p325) target = $region40
        $region39: #{vlm_double_critic_forward.1} parent=19 // pred_region
          %s328 = sand.u32 %s19, 1
          %s329 = scalar_lea.sflag [#allocation6], %s328
          %s330 = sand.u32 %s172, 1
          %s331 = smul.addr %s330, 128
          %s332 = scalar_lea.vmem [#allocation7], %s331
          %s334 = ssub.s32 2048, 2048
          %335 = vsyncadd %s329, %s334
          %s336 = smul.addr %s26, 32
          %s337 = smul.addr %s336, 64
          %s338 = scalar_lea.hbm %s5, %s337
          %s339 = sshll.u32 %s332, 4
          %s340 = int_to_ptr.vmem [resolvable:$true] %s339
          %345 = dma.hbm_to_vmem [thread:$0]  %s338, 2048, %s340, %s329, 64, 64, 4
        $region40: #{vlm_double_critic_forward.1} parent=19 // pred_fallthru
          _
        // Predicated region
        $region41: #{vlm_double_critic_forward.1} parent=19 // pred_check
          %p346 = pneg %p208
        $region42: #{vlm_double_critic_forward.1} parent=19 // pred_check_branch
          %348 = sbr.rel (%p346) target = $region44
        $region43: #{vlm_double_critic_forward.1} parent=19 // pred_region
          %p349 = scmp.lt.s32.totalorder %s26, 1
          %s350 = scalar_select %p349, %s26, 1
          %s351 = scalar_lea.vmem %s6, %s350
        $region44: #{vlm_double_critic_forward.1} parent=19 // pred_fallthru
          _
      $region20: #{vlm_double_critic_forward.1} parent=5 // pred_fallthru
        _
      %p352 = scmp.le.s32.totalorder 1, %s19
      %p353 = scmp.lt.s32.totalorder %s19, 5
      %p354 = pnand %p352, %p353
      %p355 = pneg %p354
      // Predicated region
      $region45: #{vlm_double_critic_forward.1} parent=5 // pred_check
        _
      $region46: #{vlm_double_critic_forward.1} parent=5 // pred_check_branch
        %357 = sbr.rel (%p354) target = $region48
      $region47: #{vlm_double_critic_forward.1} parent=5 // pred_region
        %s358 = ssub.s32 %s19, 1
        %s359 = sand.u32 %s67, 1
        %s360 = scalar_lea.sflag [#allocation4], %s359
        %s361 = sand.u32 %s67, 1
        %s362 = smul.addr %s361, 128
        %s363 = scalar_lea.vmem [#allocation3], %s362
        // Predicated region
        $region49: #{vlm_double_critic_forward.1} parent=47 // pred_check
          %p364 = pneg %p80
        $region50: #{vlm_double_critic_forward.1} parent=47 // pred_check_branch
          %366 = sbr.rel (%p364) target = $region52
        $region51: #{vlm_double_critic_forward.1} parent=47 // pred_region
          %367 = dma.done %s360, 2048
        $region52: #{vlm_double_critic_forward.1} parent=47 // pred_fallthru
          _
        %s368 = sand.u32 %s24, 1
        %s369 = scalar_lea.sflag [#allocation6], %s368
        %s370 = sand.u32 %s123, 1
        %s371 = smul.addr %s370, 128
        %s372 = scalar_lea.vmem [#allocation5], %s371
        // Predicated region
        $region53: #{vlm_double_critic_forward.1} parent=47 // pred_check
          %p373 = pneg %p136
        $region54: #{vlm_double_critic_forward.1} parent=47 // pred_check_branch
          %375 = sbr.rel (%p373) target = $region56
        $region55: #{vlm_double_critic_forward.1} parent=47 // pred_region
          %376 = dma.done %s369, 2048
        $region56: #{vlm_double_critic_forward.1} parent=47 // pred_fallthru
          _
        %s377 = sand.u32 %s24, 1
        %s378 = scalar_lea.sflag [#allocation6], %s377
        %s379 = sand.u32 %s175, 1
        %s380 = smul.addr %s379, 128
        %s381 = scalar_lea.vmem [#allocation7], %s380
        // Predicated region
        $region57: #{vlm_double_critic_forward.1} parent=47 // pred_check
          %p382 = pneg %p188
        $region58: #{vlm_double_critic_forward.1} parent=47 // pred_check_branch
          %384 = sbr.rel (%p382) target = $region60
        $region59: #{vlm_double_critic_forward.1} parent=47 // pred_region
          %385 = dma.done %s378, 2048
        $region60: #{vlm_double_critic_forward.1} parent=47 // pred_fallthru
          _
        %p386 = pneg %p52
        %p387 = pneg %p49
        %s388 = sand.u32 %s67, 1
        %s389 = scalar_lea.sflag [#allocation4], %s388
        %s390 = sand.u32 %s67, 1
        %s391 = smul.addr %s390, 128
        %s392 = scalar_lea.vmem [#allocation3], %s391
        %p393 = pneg %p80
        %p394 = pneg %p77
        %p395 = scmp.lt.s32.totalorder %s28, 1
        %s396 = scalar_select %p395, %s28, 1
        %p397 = scmp.lt.s32.totalorder %s29, 1
        %s398 = scalar_select %p397, %s29, 1
        %s399 = smul.addr %s396, 2
        %s400 = sadd.s32 %s398, %s399
        %s401 = scalar_lea.vmem %s2, %s400
        %p402 = pneg %p108
        %p403 = pneg %p105
        %s404 = sand.u32 %s24, 1
        %s405 = scalar_lea.sflag [#allocation6], %s404
        %s406 = sand.u32 %s123, 1
        %s407 = smul.addr %s406, 128
        %s408 = scalar_lea.vmem [#allocation5], %s407
        %p409 = pneg %p136
        %p410 = pneg %p133
        %p411 = scmp.lt.s32.totalorder %s28, 1
        %s412 = scalar_select %p411, %s28, 1
        %s413 = smul.addr %s412, 2
        %s414 = scalar_lea.vmem %s4, %s413
        %p415 = pneg %p162
        %p416 = pneg %p159
        %s417 = sand.u32 %s24, 1
        %s418 = scalar_lea.sflag [#allocation6], %s417
        %s419 = sand.u32 %s175, 1
        %s420 = smul.addr %s419, 128
        %s421 = scalar_lea.vmem [#allocation7], %s420
        %p422 = pneg %p188
        %p423 = pneg %p185
        %p424 = scmp.lt.s32.totalorder %s28, 1
        %s425 = scalar_select %p424, %s28, 1
        %s426 = scalar_lea.vmem %s6, %s425
        %p427 = pneg %p214
        %p428 = pneg %p211
        %p429 = pneg %p240
        %p430 = pneg %p237
        %p431 = scmp.lt.s32.totalorder %s28, 1
        %s432 = scalar_select %p431, %s28, 1
        %s433 = smul.addr %s432, 8
        %s434 = scalar_lea.vmem %s7, %s433
        %p435 = scmp.lt.s32.totalorder %s28, 1
        %s436 = scalar_select %p435, %s28, 1
        %p437 = scmp.lt.s32.totalorder %s29, 1
        %s438 = scalar_select %p437, %s29, 1
        %s439 = smul.addr %s436, 2
        %s440 = sadd.s32 %s438, %s439
        %s441 = scalar_lea.vmem %s2, %s440
        %s442 = smul.u32 16, %s29
        %p443 = scmp.lt.s32.totalorder %s28, 1
        %s444 = scalar_select %p443, %s28, 1
        %s445 = smul.addr %s444, 2
        %s446 = scalar_lea.vmem %s4, %s445
        %p447 = scmp.lt.s32.totalorder %s28, 1
        %s448 = scalar_select %p447, %s28, 1
        %s449 = scalar_lea.vmem %s6, %s448
        %p450 = scmp.lt.s32.totalorder %s28, 1
        %s451 = scalar_select %p450, %s28, 1
        %s452 = smul.addr %s451, 8
        %s453 = scalar_lea.vmem %s7, %s452
        %p455 = scmp.eq.s32.totalorder %s29, 0
        // Predicated region
        $region61: #{vlm_double_critic_forward.1} parent=47 // pred_check
          %p456 = pneg %p455
        $region62: #{vlm_double_critic_forward.1} parent=47 // pred_check_branch
          %458 = sbr.rel (%p456) target = $region64
        $region63: #{vlm_double_critic_forward.1} parent=47 // pred_region
          %459 = vst [vmem:[#allocation2] sm:$0xff] 0.0
          %460 = vst [vmem:[#allocation2 + $0x8] sm:$0xff] 0.0
        $region64: #{vlm_double_critic_forward.1} parent=47 // pred_fallthru
          _
        %v461 = vld [vmem:[%s0] sm:$0xff]
        %v462 = vld [vmem:[%s0 + $0x8] sm:$0xff]
        %v463 = vpack.c.bf16 %v461, %v461
        %v464 = vpack.c.bf16 %v462, %v462
        %v465 = vld [vmem:[%s363] sm:$0xf]
        %v466 = vld [vmem:[%s363 + $0x4] sm:$0xf]
        %v467 = vld [vmem:[%s363 + $0x8] sm:$0xf]
        %v468 = vld [vmem:[%s363 + $0xc] sm:$0xf]
        %v469 = vld [vmem:[%s363 + $0x10] sm:$0xf]
        %v470 = vld [vmem:[%s363 + $0x14] sm:$0xf]
        %v471 = vld [vmem:[%s363 + $0x18] sm:$0xf]
        %v472 = vld [vmem:[%s363 + $0x1c] sm:$0xf]
        %v473 = vld [vmem:[%s363 + $0x20] sm:$0xf]
        %v474 = vld [vmem:[%s363 + $0x24] sm:$0xf]
        %v475 = vld [vmem:[%s363 + $0x28] sm:$0xf]
        %v476 = vld [vmem:[%s363 + $0x2c] sm:$0xf]
        %v477 = vld [vmem:[%s363 + $0x30] sm:$0xf]
        %v478 = vld [vmem:[%s363 + $0x34] sm:$0xf]
        %v479 = vld [vmem:[%s363 + $0x38] sm:$0xf]
        %v480 = vld [vmem:[%s363 + $0x3c] sm:$0xf]
        %v481 = vld [vmem:[%s363 + $0x40] sm:$0xf]
        %v482 = vld [vmem:[%s363 + $0x44] sm:$0xf]
        %v483 = vld [vmem:[%s363 + $0x48] sm:$0xf]
        %v484 = vld [vmem:[%s363 + $0x4c] sm:$0xf]
        %v485 = vld [vmem:[%s363 + $0x50] sm:$0xf]
        %v486 = vld [vmem:[%s363 + $0x54] sm:$0xf]
        %v487 = vld [vmem:[%s363 + $0x58] sm:$0xf]
        %v488 = vld [vmem:[%s363 + $0x5c] sm:$0xf]
        %v489 = vld [vmem:[%s363 + $0x60] sm:$0xf]
        %v490 = vld [vmem:[%s363 + $0x64] sm:$0xf]
        %v491 = vld [vmem:[%s363 + $0x68] sm:$0xf]
        %v492 = vld [vmem:[%s363 + $0x6c] sm:$0xf]
        %v493 = vld [vmem:[%s363 + $0x70] sm:$0xf]
        %v494 = vld [vmem:[%s363 + $0x74] sm:$0xf]
        %v495 = vld [vmem:[%s363 + $0x78] sm:$0xf]
        %v496 = vld [vmem:[%s363 + $0x7c] sm:$0xf]
        %v497 = vld [vmem:[%s441] sm:$0x1]
        %v499 = vlaneseq
        %v500 = vshrl.u32 %v499, 7
        %v501 = vsub.s32 0, %v500
        %v502 = vrot.slane %v497, %v501
        %v536 = vunpack.c.l.b16 %v465
        %v537 = vunpack.c.l.b16 %v466
        %v538 = vunpack.c.l.b16 %v467
        %v539 = vunpack.c.l.b16 %v468
        %v540 = vunpack.c.l.b16 %v469
        %v541 = vunpack.c.l.b16 %v470
        %v542 = vunpack.c.l.b16 %v471
        %v543 = vunpack.c.l.b16 %v472
        %v544 = vunpack.c.l.b16 %v473
        %v545 = vunpack.c.l.b16 %v474
        %v546 = vunpack.c.l.b16 %v475
        %v547 = vunpack.c.l.b16 %v476
        %v548 = vunpack.c.l.b16 %v477
        %v549 = vunpack.c.l.b16 %v478
        %v550 = vunpack.c.l.b16 %v479
        %v551 = vunpack.c.l.b16 %v480
        %v552 = vunpack.c.l.b16 %v481
        %v553 = vunpack.c.l.b16 %v482
        %v554 = vunpack.c.l.b16 %v483
        %v555 = vunpack.c.l.b16 %v484
        %v556 = vunpack.c.l.b16 %v485
        %v557 = vunpack.c.l.b16 %v486
        %v558 = vunpack.c.l.b16 %v487
        %v559 = vunpack.c.l.b16 %v488
        %v560 = vunpack.c.l.b16 %v489
        %v561 = vunpack.c.l.b16 %v490
        %v562 = vunpack.c.l.b16 %v491
        %v563 = vunpack.c.l.b16 %v492
        %v564 = vunpack.c.l.b16 %v493
        %v565 = vunpack.c.l.b16 %v494
        %v566 = vunpack.c.l.b16 %v495
        %v567 = vunpack.c.l.b16 %v496
        %v568 = vpack.c.b16 %v537, %v536
        %v569 = vpack.c.b16 %v539, %v538
        %v570 = vpack.c.b16 %v541, %v540
        %v571 = vpack.c.b16 %v543, %v542
        %v572 = vpack.c.b16 %v545, %v544
        %v573 = vpack.c.b16 %v547, %v546
        %v574 = vpack.c.b16 %v549, %v548
        %v575 = vpack.c.b16 %v551, %v550
        %v576 = vpack.c.b16 %v553, %v552
        %v577 = vpack.c.b16 %v555, %v554
        %v578 = vpack.c.b16 %v557, %v556
        %v579 = vpack.c.b16 %v559, %v558
        %v580 = vpack.c.b16 %v561, %v560
        %v581 = vpack.c.b16 %v563, %v562
        %v582 = vpack.c.b16 %v565, %v564
        %v583 = vpack.c.b16 %v567, %v566
        %600 = vmatprep.subr.bf16.mxu0 0
        %601 = vmatpush1.bf16.msra.mxu0 %v575
        %602 = vmatprep.subr.bf16.mxu0 0
        %603 = vmatpush1.bf16.msra.mxu0 %v574
        %604 = vmatprep.subr.bf16.mxu0 0
        %605 = vmatpush1.bf16.msra.mxu0 %v573
        %606 = vmatprep.subr.bf16.mxu0 0
        %607 = vmatpush1.bf16.msra.mxu0 %v572
        %608 = vmatprep.subr.bf16.mxu0 0
        %609 = vmatpush1.bf16.msra.mxu0 %v571
        %610 = vmatprep.subr.bf16.mxu0 0
        %611 = vmatpush1.bf16.msra.mxu0 %v570
        %612 = vmatprep.subr.bf16.mxu0 0
        %613 = vmatpush1.bf16.msra.mxu0 %v569
        %614 = vmatprep.subr.bf16.mxu0 0
        %615 = vmatpush1.bf16.msra.mxu0 %v568
        %616 = vmatprep.subr.bf16.mxu0 0
        %617 = vmatpush2.bf16.msra.mxu0 %v583
        %618 = vmatprep.subr.bf16.mxu0 0
        %619 = vmatpush2.bf16.msra.mxu0 %v582
        %620 = vmatprep.subr.bf16.mxu0 0
        %621 = vmatpush2.bf16.msra.mxu0 %v581
        %622 = vmatprep.subr.bf16.mxu0 0
        %623 = vmatpush2.bf16.msra.mxu0 %v580
        %624 = vmatprep.subr.bf16.mxu0 0
        %625 = vmatpush2.bf16.msra.mxu0 %v579
        %626 = vmatprep.subr.bf16.mxu0 0
        %627 = vmatpush2.bf16.msra.mxu0 %v578
        %628 = vmatprep.subr.bf16.mxu0 0
        %629 = vmatpush2.bf16.msra.mxu0 %v577
        %630 = vmatprep.subr.bf16.mxu0 0
        %631 = vmatpush2.bf16.msra.mxu0 %v576
        %632 = vmatprep.mubr.bf16.mxu0 %v464
        %633 = vmatmul.mubr.bf16.gmra.mxu0 %v463
        %v634 = vpop.f32.mrf.mxu0
        %v635 = vadd.f32 %v502, %v634
        %v636 = vpop.f32.mrf.mxu0
        %v637 = vpop.f32.mrf.mxu0
        %v638 = vpop.f32.mrf.mxu0
        %639 = vdwg.mxu0
        %v640 = vmax.f32 %v635, 0.0
        %v641 = vld [vmem:[#allocation2] sm:$0xff]
        %v642 = vld [vmem:[#allocation2 + $0x8] sm:$0xff]
        %v643 = vpack.c.bf16 %v640, %v640
        %v644 = vld [vmem:[%s372] sm:$0xff]
        %v645 = vld [vmem:[%s372 + $0x8] sm:$0xff]
        %v646 = vld [vmem:[%s372 + $0x10] sm:$0xff]
        %v647 = vld [vmem:[%s372 + $0x18] sm:$0xff]
        %v648 = vld [vmem:[%s372 + $0x20] sm:$0xff]
        %v649 = vld [vmem:[%s372 + $0x28] sm:$0xff]
        %v650 = vld [vmem:[%s372 + $0x30] sm:$0xff]
        %v651 = vld [vmem:[%s372 + $0x38] sm:$0xff]
        %v652 = vld [vmem:[%s372 + $0x40] sm:$0xff]
        %v653 = vld [vmem:[%s372 + $0x48] sm:$0xff]
        %v654 = vld [vmem:[%s372 + $0x50] sm:$0xff]
        %v655 = vld [vmem:[%s372 + $0x58] sm:$0xff]
        %v656 = vld [vmem:[%s372 + $0x60] sm:$0xff]
        %v657 = vld [vmem:[%s372 + $0x68] sm:$0xff]
        %v658 = vld [vmem:[%s372 + $0x70] sm:$0xff]
        %v659 = vld [vmem:[%s372 + $0x78] sm:$0xff]
        %v676 = vunpack.c.l.b16 %v644
        %v677 = vunpack.c.h.b16 %v644
        %v678 = vunpack.c.l.b16 %v645
        %v679 = vunpack.c.h.b16 %v645
        %v680 = vunpack.c.l.b16 %v646
        %v681 = vunpack.c.h.b16 %v646
        %v682 = vunpack.c.l.b16 %v647
        %v683 = vunpack.c.h.b16 %v647
        %v684 = vunpack.c.l.b16 %v648
        %v685 = vunpack.c.h.b16 %v648
        %v686 = vunpack.c.l.b16 %v649
        %v687 = vunpack.c.h.b16 %v649
        %v688 = vunpack.c.l.b16 %v650
        %v689 = vunpack.c.h.b16 %v650
        %v690 = vunpack.c.l.b16 %v651
        %v691 = vunpack.c.h.b16 %v651
        %v692 = vunpack.c.l.b16 %v652
        %v693 = vunpack.c.h.b16 %v652
        %v694 = vunpack.c.l.b16 %v653
        %v695 = vunpack.c.h.b16 %v653
        %v696 = vunpack.c.l.b16 %v654
        %v697 = vunpack.c.h.b16 %v654
        %v698 = vunpack.c.l.b16 %v655
        %v699 = vunpack.c.h.b16 %v655
        %v700 = vunpack.c.l.b16 %v656
        %v701 = vunpack.c.h.b16 %v656
        %v702 = vunpack.c.l.b16 %v657
        %v703 = vunpack.c.h.b16 %v657
        %v704 = vunpack.c.l.b16 %v658
        %v705 = vunpack.c.h.b16 %v658
        %v706 = vunpack.c.l.b16 %v659
        %v707 = vunpack.c.h.b16 %v659
        %v708 = vpack.c.b16 %v678, %v676
        %v709 = vpack.c.b16 %v679, %v677
        %v710 = vpack.c.b16 %v682, %v680
        %v711 = vpack.c.b16 %v683, %v681
        %v712 = vpack.c.b16 %v686, %v684
        %v713 = vpack.c.b16 %v687, %v685
        %v714 = vpack.c.b16 %v690, %v688
        %v715 = vpack.c.b16 %v691, %v689
        %v716 = vpack.c.b16 %v694, %v692
        %v717 = vpack.c.b16 %v695, %v693
        %v718 = vpack.c.b16 %v698, %v696
        %v719 = vpack.c.b16 %v699, %v697
        %v720 = vpack.c.b16 %v702, %v700
        %v721 = vpack.c.b16 %v703, %v701
        %v722 = vpack.c.b16 %v706, %v704
        %v723 = vpack.c.b16 %v707, %v705
        %740 = vmatprep.subr.bf16.mxu0 %v723
        %741 = vmatpush1.bf16.msra.mxu0 %v722
        %742 = vmatprep.subr.bf16.mxu0 %v721
        %743 = vmatpush1.bf16.msra.mxu0 %v720
        %744 = vmatprep.subr.bf16.mxu0 %v719
        %745 = vmatpush1.bf16.msra.mxu0 %v718
        %746 = vmatprep.subr.bf16.mxu0 %v717
        %747 = vmatpush1.bf16.msra.mxu0 %v716
        %748 = vmatprep.subr.bf16.mxu0 %v715
        %749 = vmatpush1.bf16.msra.mxu0 %v714
        %750 = vmatprep.subr.bf16.mxu0 %v713
        %751 = vmatpush1.bf16.msra.mxu0 %v712
        %752 = vmatprep.subr.bf16.mxu0 %v711
        %753 = vmatpush1.bf16.msra.mxu0 %v710
        %754 = vmatprep.subr.bf16.mxu0 %v709
        %755 = vmatpush1.bf16.msra.mxu0 %v708
        %756 = vmatprep.subr.bf16.mxu0 0
        %757 = vmatpush2.bf16.msra.mxu0 0
        %758 = vmatprep.subr.bf16.mxu0 0
        %759 = vmatpush2.bf16.msra.mxu0 0
        %760 = vmatprep.subr.bf16.mxu0 0
        %761 = vmatpush2.bf16.msra.mxu0 0
        %762 = vmatprep.subr.bf16.mxu0 0
        %763 = vmatpush2.bf16.msra.mxu0 0
        %764 = vmatprep.subr.bf16.mxu0 0
        %765 = vmatpush2.bf16.msra.mxu0 0
        %766 = vmatprep.subr.bf16.mxu0 0
        %767 = vmatpush2.bf16.msra.mxu0 0
        %768 = vmatprep.subr.bf16.mxu0 0
        %769 = vmatpush2.bf16.msra.mxu0 0
        %770 = vmatprep.subr.bf16.mxu0 0
        %771 = vmatpush2.bf16.msra.mxu0 0
        %772 = vmatprep.mubr.bf16.mxu0 0
        %773 = vmatmul.mubr.bf16.gmra.mxu0 %v643
        %v774 = vpop.f32.mrf.mxu0
        %v775 = vadd.f32 0.0, %v774
        %v776 = vpop.f32.mrf.mxu0
        %v777 = vadd.f32 0.0, %v776
        %v778 = vpop.f32.mrf.mxu0
        %v779 = vpop.f32.mrf.mxu0
        %780 = vdwg.mxu0
        %v781 = vadd.f32 %v641, %v775
        %v782 = vadd.f32 %v642, %v777
        %783 = vst [vmem:[#allocation2] sm:$0xff] %v781
        %784 = vst [vmem:[#allocation2 + $0x8] sm:$0xff] %v782
        %p785 = scmp.eq.s32.totalorder %s29, 1
        // Predicated region
        $region65: #{vlm_double_critic_forward.1} parent=47 // pred_check
          %p786 = pneg %p785
        $region66: #{vlm_double_critic_forward.1} parent=47 // pred_check_branch
          %788 = sbr.rel (%p786) target = $region68
        $region67: #{vlm_double_critic_forward.1} parent=47 // pred_region
          %v789 = vld [vmem:[#allocation2] sm:$0xff]
          %v790 = vld [vmem:[#allocation2 + $0x8] sm:$0xff]
          %v791 = vld [vmem:[%s446] sm:$0x3]
          %v793 = vlaneseq
          %v794 = vshrl.u32 %v793, 7
          %v795 = vsub.s32 0, %v794
          %v796 = vrot.slane %v791, %v795
          %v797 = vlaneseq
          %v798 = vshrl.u32 %v797, 7
          %v799 = vsub.s32 1, %v798
          %v800 = vrot.slane %v791, %v799
          %v803 = vadd.f32 %v789, %v796
          %v804 = vadd.f32 %v790, %v800
          %v805 = vmax.f32 %v803, 0.0
          %v806 = vmax.f32 %v804, 0.0
          %v807 = vpack.c.bf16 %v805, %v805
          %v808 = vpack.c.bf16 %v806, %v806
          %v809 = vld [vmem:[%s381] sm:$0xf]
          %v810 = vld [vmem:[%s381 + $0x4] sm:$0xf]
          %v811 = vld [vmem:[%s381 + $0x8] sm:$0xf]
          %v812 = vld [vmem:[%s381 + $0xc] sm:$0xf]
          %v813 = vld [vmem:[%s381 + $0x10] sm:$0xf]
          %v814 = vld [vmem:[%s381 + $0x14] sm:$0xf]
          %v815 = vld [vmem:[%s381 + $0x18] sm:$0xf]
          %v816 = vld [vmem:[%s381 + $0x1c] sm:$0xf]
          %v817 = vld [vmem:[%s381 + $0x20] sm:$0xf]
          %v818 = vld [vmem:[%s381 + $0x24] sm:$0xf]
          %v819 = vld [vmem:[%s381 + $0x28] sm:$0xf]
          %v820 = vld [vmem:[%s381 + $0x2c] sm:$0xf]
          %v821 = vld [vmem:[%s381 + $0x30] sm:$0xf]
          %v822 = vld [vmem:[%s381 + $0x34] sm:$0xf]
          %v823 = vld [vmem:[%s381 + $0x38] sm:$0xf]
          %v824 = vld [vmem:[%s381 + $0x3c] sm:$0xf]
          %v825 = vld [vmem:[%s381 + $0x40] sm:$0xf]
          %v826 = vld [vmem:[%s381 + $0x44] sm:$0xf]
          %v827 = vld [vmem:[%s381 + $0x48] sm:$0xf]
          %v828 = vld [vmem:[%s381 + $0x4c] sm:$0xf]
          %v829 = vld [vmem:[%s381 + $0x50] sm:$0xf]
          %v830 = vld [vmem:[%s381 + $0x54] sm:$0xf]
          %v831 = vld [vmem:[%s381 + $0x58] sm:$0xf]
          %v832 = vld [vmem:[%s381 + $0x5c] sm:$0xf]
          %v833 = vld [vmem:[%s381 + $0x60] sm:$0xf]
          %v834 = vld [vmem:[%s381 + $0x64] sm:$0xf]
          %v835 = vld [vmem:[%s381 + $0x68] sm:$0xf]
          %v836 = vld [vmem:[%s381 + $0x6c] sm:$0xf]
          %v837 = vld [vmem:[%s381 + $0x70] sm:$0xf]
          %v838 = vld [vmem:[%s381 + $0x74] sm:$0xf]
          %v839 = vld [vmem:[%s381 + $0x78] sm:$0xf]
          %v840 = vld [vmem:[%s381 + $0x7c] sm:$0xf]
          %v841 = vld [vmem:[%s449] sm:$0x1]
          %v843 = vlaneseq
          %v844 = vshrl.u32 %v843, 7
          %v845 = vsub.s32 0, %v844
          %v846 = vrot.slane %v841, %v845
          %v880 = vunpack.c.l.b16 %v809
          %v881 = vunpack.c.l.b16 %v810
          %v882 = vunpack.c.l.b16 %v811
          %v883 = vunpack.c.l.b16 %v812
          %v884 = vunpack.c.l.b16 %v813
          %v885 = vunpack.c.l.b16 %v814
          %v886 = vunpack.c.l.b16 %v815
          %v887 = vunpack.c.l.b16 %v816
          %v888 = vunpack.c.l.b16 %v817
          %v889 = vunpack.c.l.b16 %v818
          %v890 = vunpack.c.l.b16 %v819
          %v891 = vunpack.c.l.b16 %v820
          %v892 = vunpack.c.l.b16 %v821
          %v893 = vunpack.c.l.b16 %v822
          %v894 = vunpack.c.l.b16 %v823
          %v895 = vunpack.c.l.b16 %v824
          %v896 = vunpack.c.l.b16 %v825
          %v897 = vunpack.c.l.b16 %v826
          %v898 = vunpack.c.l.b16 %v827
          %v899 = vunpack.c.l.b16 %v828
          %v900 = vunpack.c.l.b16 %v829
          %v901 = vunpack.c.l.b16 %v830
          %v902 = vunpack.c.l.b16 %v831
          %v903 = vunpack.c.l.b16 %v832
          %v904 = vunpack.c.l.b16 %v833
          %v905 = vunpack.c.l.b16 %v834
          %v906 = vunpack.c.l.b16 %v835
          %v907 = vunpack.c.l.b16 %v836
          %v908 = vunpack.c.l.b16 %v837
          %v909 = vunpack.c.l.b16 %v838
          %v910 = vunpack.c.l.b16 %v839
          %v911 = vunpack.c.l.b16 %v840
          %v912 = vpack.c.b16 %v881, %v880
          %v913 = vpack.c.b16 %v883, %v882
          %v914 = vpack.c.b16 %v885, %v884
          %v915 = vpack.c.b16 %v887, %v886
          %v916 = vpack.c.b16 %v889, %v888
          %v917 = vpack.c.b16 %v891, %v890
          %v918 = vpack.c.b16 %v893, %v892
          %v919 = vpack.c.b16 %v895, %v894
          %v920 = vpack.c.b16 %v897, %v896
          %v921 = vpack.c.b16 %v899, %v898
          %v922 = vpack.c.b16 %v901, %v900
          %v923 = vpack.c.b16 %v903, %v902
          %v924 = vpack.c.b16 %v905, %v904
          %v925 = vpack.c.b16 %v907, %v906
          %v926 = vpack.c.b16 %v909, %v908
          %v927 = vpack.c.b16 %v911, %v910
          %944 = vmatprep.subr.bf16.mxu0 0
          %945 = vmatpush1.bf16.msra.mxu0 %v919
          %946 = vmatprep.subr.bf16.mxu0 0
          %947 = vmatpush1.bf16.msra.mxu0 %v918
          %948 = vmatprep.subr.bf16.mxu0 0
          %949 = vmatpush1.bf16.msra.mxu0 %v917
          %950 = vmatprep.subr.bf16.mxu0 0
          %951 = vmatpush1.bf16.msra.mxu0 %v916
          %952 = vmatprep.subr.bf16.mxu0 0
          %953 = vmatpush1.bf16.msra.mxu0 %v915
          %954 = vmatprep.subr.bf16.mxu0 0
          %955 = vmatpush1.bf16.msra.mxu0 %v914
          %956 = vmatprep.subr.bf16.mxu0 0
          %957 = vmatpush1.bf16.msra.mxu0 %v913
          %958 = vmatprep.subr.bf16.mxu0 0
          %959 = vmatpush1.bf16.msra.mxu0 %v912
          %960 = vmatprep.subr.bf16.mxu0 0
          %961 = vmatpush2.bf16.msra.mxu0 %v927
          %962 = vmatprep.subr.bf16.mxu0 0
          %963 = vmatpush2.bf16.msra.mxu0 %v926
          %964 = vmatprep.subr.bf16.mxu0 0
          %965 = vmatpush2.bf16.msra.mxu0 %v925
          %966 = vmatprep.subr.bf16.mxu0 0
          %967 = vmatpush2.bf16.msra.mxu0 %v924
          %968 = vmatprep.subr.bf16.mxu0 0
          %969 = vmatpush2.bf16.msra.mxu0 %v923
          %970 = vmatprep.subr.bf16.mxu0 0
          %971 = vmatpush2.bf16.msra.mxu0 %v922
          %972 = vmatprep.subr.bf16.mxu0 0
          %973 = vmatpush2.bf16.msra.mxu0 %v921
          %974 = vmatprep.subr.bf16.mxu0 0
          %975 = vmatpush2.bf16.msra.mxu0 %v920
          %976 = vmatprep.mubr.bf16.mxu0 %v808
          %977 = vmatmul.mubr.bf16.gmra.mxu0 %v807
          %v978 = vpop.f32.mrf.mxu0
          %v979 = vadd.f32 %v846, %v978
          %v980 = vpop.f32.mrf.mxu0
          %v981 = vpop.f32.mrf.mxu0
          %v982 = vpop.f32.mrf.mxu0
          %983 = vdwg.mxu0
          %984 = vst [vmem:[%s453] sm:$0xff] %v979
        $region68: #{vlm_double_critic_forward.1} parent=47 // pred_fallthru
          _
        %p985 = scmp.lt.s32.totalorder %s28, 1
        %s986 = scalar_select %p985, %s28, 1
        %s987 = smul.addr %s986, 8
        %s988 = scalar_lea.vmem %s7, %s987
        // Predicated region
        $region69: #{vlm_double_critic_forward.1} parent=47 // pred_check
          %p989 = pneg %p237
        $region70: #{vlm_double_critic_forward.1} parent=47 // pred_check_branch
          %991 = sbr.rel (%p989) target = $region72
        $region71: #{vlm_double_critic_forward.1} parent=47 // pred_region
          _
        $region72: #{vlm_double_critic_forward.1} parent=47 // pred_fallthru
          _
      $region48: #{vlm_double_critic_forward.1} parent=5 // pred_fallthru
        _
      %p992 = scmp.le.s32.totalorder 2, %s19
      // Predicated region
      $region73: #{vlm_double_critic_forward.1} parent=5 // pred_check
        %p993 = pneg %p992
      $region74: #{vlm_double_critic_forward.1} parent=5 // pred_check_branch
        %995 = sbr.rel (%p993) target = $region76
      $region75: #{vlm_double_critic_forward.1} parent=5 // pred_region
        %s996 = ssub.s32 %s19, 2
        // Predicated region
        $region77: #{vlm_double_critic_forward.1} parent=75 // pred_check
          %p997 = pneg %p243
        $region78: #{vlm_double_critic_forward.1} parent=75 // pred_check_branch
          %999 = sbr.rel (%p997) target = $region80
        $region79: #{vlm_double_critic_forward.1} parent=75 // pred_region
          %p1000 = scmp.lt.s32.totalorder %s30, 1
          %s1001 = scalar_select %p1000, %s30, 1
          %s1002 = smul.addr %s1001, 8
          %s1003 = scalar_lea.vmem %s7, %s1002
        $region80: #{vlm_double_critic_forward.1} parent=75 // pred_fallthru
          _
      $region76: #{vlm_double_critic_forward.1} parent=5 // pred_fallthru
        _
    $region6: #{vlm_double_critic_forward.1} parent=1 // loop_footer
      %s23 = sadd.s32 1, %s19
    $region7: #{vlm_double_critic_forward.1} parent=1 // loop_footer_branch
      %18 = sbr.rel target = $region3
    $region8: #{vlm_double_critic_forward.1} parent=1 // loop_exit
      _
    %1004 = vsyncpa [#allocation4], 1
    %s1005 = scalar_lea.sflag [#allocation4], 1
    %1006 = vsyncpa %s1005, 1
    %1007 = vsyncpa [#allocation6], 1
    %s1008 = scalar_lea.sflag [#allocation6], 1
    %1009 = vsyncpa %s1008, 1

</llo_original>
